<compile_context>
chip_gen: v7x
topology: tpu7x:2x2x1
jax: 0.10.0
libtpu: 0.0.40
codegen_flags: <defaults>
</compile_context>

<pallas_src>
import functools

import jax
import jax.numpy as jnp
from jax.experimental import pallas as pl
from jax.experimental.pallas import tpu as pltpu

LANE = 128


def _round_up(n, m):
    return ((n + m - 1) // m) * m


def _default_compute_dtype():
    """bf16 elementwise on chips with native bf16 VALU (v6e/v7x), f32 otherwise."""
    try:
        kind = jax.devices()[0].device_kind.lower()
    except Exception:
        return jnp.float32
    for old in ("v2", "v3", "v4", "v5"):
        if old in kind:
            return jnp.float32
    return jnp.bfloat16


def dqn_kernel(x_ref, w1_ref, b1_ref, w2_ref, b2_ref, w3_ref, b3_ref, out_ref,
               *, num_actions):
    """Fused 3-layer MLP: Linear->ReLU, Linear->ReLU, Linear (narrow store)."""
    cdt = w1_ref.dtype                                # elementwise compute dtype
    x = x_ref[...].astype(cdt)                        # (TB, in_dim)
    in_dim = x.shape[1]

    # ---- Layer 1 on the VPU: K = in_dim is tiny -> unrolled broadcast FMAs ----
    h1 = x[:, 0:1] * w1_ref[0:1, :] + b1_ref[...]     # (TB, 256)
    for k in range(1, in_dim):                        # static unroll (in_dim tiny)
        h1 = h1 + x[:, k:k + 1] * w1_ref[k:k + 1, :]
    h1 = jnp.maximum(h1, 0.0).astype(jnp.bfloat16)    # MXU operand dtype

    # ---- Layer 2 on the MXU: bf16 operands, f32 accumulate ----
    h2 = jnp.dot(h1, w2_ref[...], preferred_element_type=jnp.float32)  # (TB, 128)
    h2 = jnp.maximum(h2.astype(cdt) + b2_ref[...], 0.0).astype(jnp.bfloat16)

    # ---- Layer 3 on the MXU: lane-dense padded compute, narrow (num_actions) store ----
    out = jnp.dot(h2, w3_ref[...], preferred_element_type=jnp.float32)  # (TB, 128)
    out = out + b3_ref[...]
    out_ref[...] = out[:, :num_actions].astype(out_ref.dtype)


def init_params(key, input_dim, output_dim):
    """PyTorch Linear default init: U(-1/sqrt(fan_in), 1/sqrt(fan_in)); W as (in, out)."""
    def linear(key, fan_in, fan_out):
        kw, kb = jax.random.split(key)
        bound = 1.0 / jnp.sqrt(float(fan_in))
        w = jax.random.uniform(kw, (fan_in, fan_out), jnp.float32, -bound, bound)
        b = jax.random.uniform(kb, (1, fan_out), jnp.float32, -bound, bound)
        return w, b

    k1, k2, k3 = jax.random.split(key, 3)
    w1, b1 = linear(k1, input_dim, 256)
    w2, b2 = linear(k2, 256, 128)
    w3, b3 = linear(k3, 128, output_dim)
    return (w1, b1, w2, b2, w3, b3)


def prepare_params(raw_params, compute_dtype=jnp.float32):
    """fc2/fc3 weights as bf16 MXU operands; layer-1 / fc2-bias elementwise params in
    `compute_dtype`; fc3 weight/bias zero-padded to a lane-dense 128 width."""
    w1, b1, w2, b2, w3, b3 = raw_params
    out_dim = w3.shape[1]
    out_pad = _round_up(out_dim, LANE)
    w3p = jnp.zeros((w3.shape[0], out_pad), jnp.bfloat16).at[:, :out_dim].set(
        w3.astype(jnp.bfloat16))
    b3p = jnp.zeros((1, out_pad), jnp.float32).at[:, :out_dim].set(
        b3.reshape(1, -1).astype(jnp.float32))
    return (w1.astype(compute_dtype), b1.reshape(1, -1).astype(compute_dtype),
            w2.astype(jnp.bfloat16), b2.reshape(1, -1).astype(compute_dtype),
            w3p, b3p)


def dqn_forward(x, kernel_params, num_actions, *, block_b=2048):
    """Q-values (B, num_actions) for a batch of states x (B, input_dim)."""
    w1, b1, w2, b2, w3, b3 = kernel_params
    B, in_dim = x.shape
    h1_dim, h2_dim, out_pad = w1.shape[1], w2.shape[1], w3.shape[1]

    # Tile count first, then tile size: avoids near-2x batch padding and forces
    # >=2 grid steps for moderately sized batches so v7x megacore can shard the
    # batch across both TensorCores.
    n_tiles = pl.cdiv(B, block_b)
    if B >= 16:
        n_tiles = max(n_tiles, 2)
    tb = _round_up(pl.cdiv(B, n_tiles), 8)
    b_pad = n_tiles * tb
    if b_pad != B:
        x = jnp.pad(x, ((0, b_pad - B), (0, 0)))

    def const_spec(shape):
        # Same block every grid step -> weights DMA'd once, stay VMEM-resident.
        return pl.BlockSpec(shape, lambda i: (0, 0))

    flops = 2 * b_pad * (in_dim * h1_dim + h1_dim * h2_dim + h2_dim * out_pad)
    param_bytes = sum(int(p.size) * p.dtype.itemsize for p in kernel_params)
    bytes_accessed = b_pad * (in_dim * x.dtype.itemsize + num_actions * 4) + param_bytes
    cost = pl.CostEstimate(flops=int(flops), bytes_accessed=int(bytes_accessed),
                           transcendentals=0)

    out = pl.pallas_call(
        functools.partial(dqn_kernel, num_actions=num_actions),
        out_shape=jax.ShapeDtypeStruct((b_pad, num_actions), jnp.float32),
        grid=(n_tiles,),
        in_specs=[
            pl.BlockSpec((tb, in_dim), lambda i: (i, 0)),   # batch-tiled states
            const_spec(w1.shape), const_spec(b1.shape),
            const_spec(w2.shape), const_spec(b2.shape),
            const_spec(w3.shape), const_spec(b3.shape),
        ],
        # Narrow (num_actions-wide) HBM output: ~42x less writeback than a
        # padded-128 f32 slab; legal because last dim equals the full array dim.
        out_specs=pl.BlockSpec((tb, num_actions), lambda i: (i, 0)),
        compiler_params=pltpu.CompilerParams(
            dimension_semantics=("parallel",),   # v7x: batch sharded over both TCs
        ),
        cost_estimate=cost,
    )(x, w1, b1, w2, b2, w3, b3)
    return out[:B]


# ---------------- pure-JAX references ----------------

def dqn_forward_ref_f32(x, raw_params):
    w1, b1, w2, b2, w3, b3 = raw_params
    h1 = jnp.maximum(x @ w1 + b1, 0.0)
    h2 = jnp.maximum(h1 @ w2 + b2, 0.0)
    return h2 @ w3 + b3


def dqn_forward_ref_kernel_numerics(x, raw_params, compute_dtype):
    """Reference mirroring the kernel's exact op/dtype sequence."""
    w1, b1, w2, b2, w3, b3 = raw_params
    cdt = compute_dtype
    xc = x.astype(cdt)
    w1c = w1.astype(cdt)
    b1c = b1.reshape(1, -1).astype(cdt)
    b2c = b2.reshape(1, -1).astype(cdt)
    h1 = xc[:, 0:1] * w1c[0:1, :] + b1c
    for k in range(1, x.shape[1]):
        h1 = h1 + xc[:, k:k + 1] * w1c[k:k + 1, :]
    h1 = jnp.maximum(h1, 0.0).astype(jnp.bfloat16)
    h2 = jnp.dot(h1, w2.astype(jnp.bfloat16), preferred_element_type=jnp.float32)
    h2 = jnp.maximum(h2.astype(cdt) + b2c, 0.0).astype(jnp.bfloat16)
    out = jnp.dot(h2, w3.astype(jnp.bfloat16), preferred_element_type=jnp.float32)
    return out + b3.reshape(1, -1)


if __name__ == "__main__":
    # Mountain Car: observation dim = 2, action dim = 3.
    input_dim, output_dim = 2, 3

    key = jax.random.PRNGKey(0)
    kx_small, kp, kx_big = jax.random.split(key, 3)
    raw_params = init_params(kp, input_dim, output_dim)

    cdt = _default_compute_dtype()
    kparams = prepare_params(raw_params, compute_dtype=cdt)

    if cdt == jnp.bfloat16:
        atol_kn = rtol_kn = 3e-2     # bf16 elementwise: allow a few bf16 ulps of drift
    else:
        atol_kn = rtol_kn = 2e-3

    # Small batch (single grid step) correctness check.
    x_small = jax.random.normal(kx_small, (8, input_dim), jnp.float32)
    out_small = jax.block_until_ready(dqn_forward(x_small, kparams, output_dim))
    assert out_small.shape == (8, output_dim)
    ref_kn = dqn_forward_ref_kernel_numerics(x_small, raw_params, cdt)
    ref_f32 = dqn_forward_ref_f32(x_small, raw_params)
    assert jnp.allclose(out_small, ref_kn, atol=atol_kn, rtol=rtol_kn), \
        "mismatch vs kernel-numerics reference"
    assert jnp.allclose(out_small, ref_f32, atol=8e-2, rtol=8e-2), \
        "mismatch vs f32 reference"

    # Larger, unaligned batch exercises the multi-step grid + padding path.
    x_big = jax.random.normal(kx_big, (1000, input_dim), jnp.float32)
    out_big = jax.block_until_ready(dqn_forward(x_big, kparams, output_dim))
    assert out_big.shape == (1000, output_dim)
    ref_big = dqn_forward_ref_kernel_numerics(x_big, raw_params, cdt)
    assert jnp.allclose(out_big, ref_big, atol=atol_kn, rtol=rtol_kn), \
        "mismatch vs kernel-numerics reference (batched)"

    print("KERNEL_OK")
</pallas_src>

<mosaic_0001>
module attributes {stable_mosaic.version = 11 : i64} {
  func.func @dqn_kernel(%arg0: i32, %arg1: memref<8x2xf32, #tpu.memory_space<vmem>>, %arg2: memref<2x256xbf16, #tpu.memory_space<vmem>>, %arg3: memref<1x256xbf16, #tpu.memory_space<vmem>>, %arg4: memref<256x128xbf16, #tpu.memory_space<vmem>>, %arg5: memref<1x128xbf16, #tpu.memory_space<vmem>>, %arg6: memref<128x128xbf16, #tpu.memory_space<vmem>>, %arg7: memref<1x128xf32, #tpu.memory_space<vmem>>, %arg8: memref<8x3xf32, #tpu.memory_space<vmem>>) attributes {dimension_semantics = [#tpu.dimension_semantics<parallel>], iteration_bounds = array<i64: 1>, scalar_prefetch = 0 : i64, scratch_operands = 0 : i64, tpu.core_type = #tpu.core_type<tc>, window_params = [{transform_indices = @transform_0, window_bounds = array<i64: 8, 2>}, {pipeline_mode = #tpu.pipeline_mode<synchronous>, transform_indices = @transform_1, window_bounds = array<i64: 2, 256>}, {pipeline_mode = #tpu.pipeline_mode<synchronous>, transform_indices = @transform_2, window_bounds = array<i64: 1, 256>}, {pipeline_mode = #tpu.pipeline_mode<synchronous>, transform_indices = @transform_3, window_bounds = array<i64: 256, 128>}, {pipeline_mode = #tpu.pipeline_mode<synchronous>, transform_indices = @transform_4, window_bounds = array<i64: 1, 128>}, {pipeline_mode = #tpu.pipeline_mode<synchronous>, transform_indices = @transform_5, window_bounds = array<i64: 128, 128>}, {pipeline_mode = #tpu.pipeline_mode<synchronous>, transform_indices = @transform_6, window_bounds = array<i64: 1, 128>}, {transform_indices = @transform_7, window_bounds = array<i64: 8, 3>}]} {
    %c0 = arith.constant 0 : index
    %c0_0 = arith.constant 0 : index
    %0 = vector.load %arg1[%c0, %c0_0] : memref<8x2xf32, #tpu.memory_space<vmem>>, vector<8x2xf32>
    %1 = arith.truncf %0 : vector<8x2xf32> to vector<8x2xbf16>
    %2 = vector.extract_strided_slice %1 {offsets = [0, 0], sizes = [8, 1], strides = [1, 1]} : vector<8x2xbf16> to vector<8x1xbf16>
    %c0_1 = arith.constant 0 : index
    %c0_2 = arith.constant 0 : index
    %3 = vector.load %arg2[%c0_1, %c0_2] : memref<2x256xbf16, #tpu.memory_space<vmem>>, vector<1x256xbf16>
    %4 = vector.broadcast %2 : vector<8x1xbf16> to vector<8x256xbf16>
    %5 = vector.broadcast %3 : vector<1x256xbf16> to vector<8x256xbf16>
    %6 = arith.mulf %4, %5 : vector<8x256xbf16>
    %c0_3 = arith.constant 0 : index
    %c0_4 = arith.constant 0 : index
    %7 = vector.load %arg3[%c0_3, %c0_4] : memref<1x256xbf16, #tpu.memory_space<vmem>>, vector<1x256xbf16>
    %8 = vector.broadcast %7 : vector<1x256xbf16> to vector<8x256xbf16>
    %9 = arith.addf %6, %8 : vector<8x256xbf16>
    %10 = vector.extract_strided_slice %1 {offsets = [0, 1], sizes = [8, 1], strides = [1, 1]} : vector<8x2xbf16> to vector<8x1xbf16>
    %c1 = arith.constant 1 : index
    %c0_5 = arith.constant 0 : index
    %11 = vector.load %arg2[%c1, %c0_5] : memref<2x256xbf16, #tpu.memory_space<vmem>>, vector<1x256xbf16>
    %12 = vector.broadcast %10 : vector<8x1xbf16> to vector<8x256xbf16>
    %13 = vector.broadcast %11 : vector<1x256xbf16> to vector<8x256xbf16>
    %14 = arith.mulf %12, %13 : vector<8x256xbf16>
    %15 = arith.addf %9, %14 : vector<8x256xbf16>
    %cst = arith.constant 0.000000e+00 : bf16
    %16 = vector.broadcast %cst : bf16 to vector<8x256xbf16>
    %17 = arith.maximumf %15, %16 : vector<8x256xbf16>
    %c0_6 = arith.constant 0 : index
    %c0_7 = arith.constant 0 : index
    %18 = vector.load %arg4[%c0_6, %c0_7] : memref<256x128xbf16, #tpu.memory_space<vmem>>, vector<256x128xbf16>
    %cst_8 = arith.constant dense<0.000000e+00> : vector<8x128xf32>
    %19 = tpu.matmul %17, %18, %cst_8 {dimension_numbers = #tpu.dot_dimension_numbers<[1], [0], [0], [1], [0, 0, 1, 1], [], []>} : vector<8x256xbf16>, vector<256x128xbf16>, vector<8x128xf32> -> vector<8x128xf32>
    %20 = arith.truncf %19 : vector<8x128xf32> to vector<8x128xbf16>
    %c0_9 = arith.constant 0 : index
    %c0_10 = arith.constant 0 : index
    %21 = vector.load %arg5[%c0_9, %c0_10] : memref<1x128xbf16, #tpu.memory_space<vmem>>, vector<1x128xbf16>
    %22 = vector.broadcast %21 : vector<1x128xbf16> to vector<8x128xbf16>
    %23 = arith.addf %20, %22 : vector<8x128xbf16>
    %cst_11 = arith.constant 0.000000e+00 : bf16
    %24 = vector.broadcast %cst_11 : bf16 to vector<8x128xbf16>
    %25 = arith.maximumf %23, %24 : vector<8x128xbf16>
    %c0_12 = arith.constant 0 : index
    %c0_13 = arith.constant 0 : index
    %26 = vector.load %arg6[%c0_12, %c0_13] : memref<128x128xbf16, #tpu.memory_space<vmem>>, vector<128x128xbf16>
    %cst_14 = arith.constant dense<0.000000e+00> : vector<8x128xf32>
    %27 = tpu.matmul %25, %26, %cst_14 {dimension_numbers = #tpu.dot_dimension_numbers<[1], [0], [0], [1], [0, 0, 1, 1], [], []>} : vector<8x128xbf16>, vector<128x128xbf16>, vector<8x128xf32> -> vector<8x128xf32>
    %c0_15 = arith.constant 0 : index
    %c0_16 = arith.constant 0 : index
    %28 = vector.load %arg7[%c0_15, %c0_16] : memref<1x128xf32, #tpu.memory_space<vmem>>, vector<1x128xf32>
    %29 = vector.broadcast %28 : vector<1x128xf32> to vector<8x128xf32>
    %30 = arith.addf %27, %29 : vector<8x128xf32>
    %31 = vector.extract_strided_slice %30 {offsets = [0, 0], sizes = [8, 3], strides = [1, 1]} : vector<8x128xf32> to vector<8x3xf32>
    %c0_17 = arith.constant 0 : index
    %c0_18 = arith.constant 0 : index
    %32 = vector.load %arg8[%c0_17, %c0_18] : memref<8x3xf32, #tpu.memory_space<vmem>>, vector<8x3xf32>
    tpu.vector_store %arg8[%c0_17, %c0_18], %31 {strides = array<i32>} : memref<8x3xf32, #tpu.memory_space<vmem>>, vector<8x3xf32>,
    return
  }
  func.func @transform_0(%arg0: i32) -> (i32, i32) {
    %c0_i32 = arith.constant 0 : i32
    %c0_i32_0 = arith.constant 0 : i32
    return %arg0, %c0_i32 : i32, i32
  }
  func.func @transform_1(%arg0: i32) -> (i32, i32) {
    %c0_i32 = arith.constant 0 : i32
    %c0_i32_0 = arith.constant 0 : i32
    %c0_i32_1 = arith.constant 0 : i32
    return %c0_i32, %c0_i32_0 : i32, i32
  }
  func.func @transform_2(%arg0: i32) -> (i32, i32) {
    %c0_i32 = arith.constant 0 : i32
    %c0_i32_0 = arith.constant 0 : i32
    %c0_i32_1 = arith.constant 0 : i32
    return %c0_i32, %c0_i32_0 : i32, i32
  }
  func.func @transform_3(%arg0: i32) -> (i32, i32) {
    %c0_i32 = arith.constant 0 : i32
    %c0_i32_0 = arith.constant 0 : i32
    %c0_i32_1 = arith.constant 0 : i32
    return %c0_i32, %c0_i32_0 : i32, i32
  }
  func.func @transform_4(%arg0: i32) -> (i32, i32) {
    %c0_i32 = arith.constant 0 : i32
    %c0_i32_0 = arith.constant 0 : i32
    %c0_i32_1 = arith.constant 0 : i32
    return %c0_i32, %c0_i32_0 : i32, i32
  }
  func.func @transform_5(%arg0: i32) -> (i32, i32) {
    %c0_i32 = arith.constant 0 : i32
    %c0_i32_0 = arith.constant 0 : i32
    %c0_i32_1 = arith.constant 0 : i32
    return %c0_i32, %c0_i32_0 : i32, i32
  }
  func.func @transform_6(%arg0: i32) -> (i32, i32) {
    %c0_i32 = arith.constant 0 : i32
    %c0_i32_0 = arith.constant 0 : i32
    %c0_i32_1 = arith.constant 0 : i32
    return %c0_i32, %c0_i32_0 : i32, i32
  }
  func.func @transform_7(%arg0: i32) -> (i32, i32) {
    %c0_i32 = arith.constant 0 : i32
    %c0_i32_0 = arith.constant 0 : i32
    return %arg0, %c0_i32 : i32, i32
  }
}

</mosaic_0001>

<llo_original>
// kernel: tpu_custom_call.1
$region0: #{tpu_custom_call.1}
  #allocation0 [shape = 'u32[]', space=smem, size = 0x4, offset = 0x4, fixed_abs, tag = 'smem constant byte address 0x4 - core index']
  #allocation1 [shape = 'u32[144,128]{1,0:T(1,128)}', space=vmem, size = 0x12000, scoped, tag = 'internal scratch']
  %s0 = inlined_call_operand.vmem [shape: f32[8,2], index: 0, kind: input, shape index: {}]
  %s1 = inlined_call_operand.vmem [shape: bf16[2,256], index: 1, kind: input, shape index: {}]
  %s2 = inlined_call_operand.vmem [shape: bf16[1,256], index: 2, kind: input, shape index: {}]
  %s3 = inlined_call_operand.hbm [shape: bf16[256,128], index: 3, kind: input, shape index: {}]
  %s4 = inlined_call_operand.vmem [shape: bf16[1,128], index: 4, kind: input, shape index: {}]
  %s5 = inlined_call_operand.hbm [shape: bf16[128,128], index: 5, kind: input, shape index: {}]
  %s6 = inlined_call_operand.vmem [shape: f32[1,128], index: 6, kind: input, shape index: {}]
  %s7 = inlined_call_operand.vmem [shape: f32[8,3], index: 7, kind: output, shape index: {}]
  %s8 = sld [smem:[#allocation0]]
  $region46: #{tpu_custom_call.1} parent=0
    _
  %s10 = ssub.s32 1, %s8
  %s11 = scalar_select 0, %s10, %s8
  $region1: #{tpu_custom_call.1} parent=0
    #allocation2 [shape = 'u8[65536]{0}', space=vmem, size = 0x10000, scoped, tag = 'input window, operand 3, single buffered']
    #allocation3 [shape = 's32[1]{0}', space=sflag, size = 0x4, scoped, tag = 'scoped memory for tpu_custom_call.1']
    #allocation4 [shape = 'u8[32768]{0}', space=vmem, size = 0x8000, scoped, tag = 'input window, operand 5, single buffered']
    #allocation5 [shape = 's32[1]{0}', space=sflag, size = 0x4, scoped, tag = 'scoped memory for tpu_custom_call.1']
    %12 = vsyncpa [#allocation3], 0
    %13 = vsyncpa [#allocation5], 0
    // Predicated region
    $region2: #{tpu_custom_call.1} parent=1 // pred_check
      _
    $region3: #{tpu_custom_call.1} parent=1 // pred_check_branch
      %15 = sbr.rel (0) target = $region5
    $region4: #{tpu_custom_call.1} parent=1 // pred_region
      _
    $region5: #{tpu_custom_call.1} parent=1 // pred_fallthru
      _
    // Predicated region
    $region6: #{tpu_custom_call.1} parent=1 // pred_check
      _
    $region7: #{tpu_custom_call.1} parent=1 // pred_check_branch
      %17 = sbr.rel (0) target = $region9
    $region8: #{tpu_custom_call.1} parent=1 // pred_region
      _
    $region9: #{tpu_custom_call.1} parent=1 // pred_fallthru
      _
    // Predicated region
    $region10: #{tpu_custom_call.1} parent=1 // pred_check
      _
    $region11: #{tpu_custom_call.1} parent=1 // pred_check_branch
      %19 = sbr.rel (0) target = $region13
    $region12: #{tpu_custom_call.1} parent=1 // pred_region
      _
    $region13: #{tpu_custom_call.1} parent=1 // pred_fallthru
      _
    // Predicated region
    $region14: #{tpu_custom_call.1} parent=1 // pred_check
      _
    $region15: #{tpu_custom_call.1} parent=1 // pred_check_branch
      %21 = sbr.rel (0) target = $region17
    $region16: #{tpu_custom_call.1} parent=1 // pred_region
      %s23 = ssub.s32 2048, 2048
      %24 = vsyncadd [#allocation3], %s23
      %s25 = sshll.u32 [#allocation2], 4
      %s26 = int_to_ptr.vmem [resolvable:$true] %s25
      %31 = dma.hbm_to_vmem [thread:$0]  %s3, 2048, %s26, [#allocation3], 64, 64, 4
    $region17: #{tpu_custom_call.1} parent=1 // pred_fallthru
      _
    // Predicated region
    $region18: #{tpu_custom_call.1} parent=1 // pred_check
      _
    $region19: #{tpu_custom_call.1} parent=1 // pred_check_branch
      %33 = sbr.rel (0) target = $region21
    $region20: #{tpu_custom_call.1} parent=1 // pred_region
      _
    $region21: #{tpu_custom_call.1} parent=1 // pred_fallthru
      _
    // Predicated region
    $region22: #{tpu_custom_call.1} parent=1 // pred_check
      _
    $region23: #{tpu_custom_call.1} parent=1 // pred_check_branch
      %35 = sbr.rel (0) target = $region25
    $region24: #{tpu_custom_call.1} parent=1 // pred_region
      %s37 = ssub.s32 1024, 1024
      %38 = vsyncadd [#allocation5], %s37
      %s39 = sshll.u32 [#allocation4], 4
      %s40 = int_to_ptr.vmem [resolvable:$true] %s39
      %45 = dma.hbm_to_vmem [thread:$0]  %s5, 1024, %s40, [#allocation5], 64, 64, 4
    $region25: #{tpu_custom_call.1} parent=1 // pred_fallthru
      _
    // Predicated region
    $region26: #{tpu_custom_call.1} parent=1 // pred_check
      _
    $region27: #{tpu_custom_call.1} parent=1 // pred_check_branch
      %47 = sbr.rel (0) target = $region29
    $region28: #{tpu_custom_call.1} parent=1 // pred_region
      _
    $region29: #{tpu_custom_call.1} parent=1 // pred_fallthru
      _
    // Predicated region
    $region30: #{tpu_custom_call.1} parent=1 // pred_check
      _
    $region31: #{tpu_custom_call.1} parent=1 // pred_check_branch
      %49 = sbr.rel (0) target = $region33
    $region32: #{tpu_custom_call.1} parent=1 // pred_region
      %50 = dma.done [#allocation3], 2048
    $region33: #{tpu_custom_call.1} parent=1 // pred_fallthru
      _
    // Predicated region
    $region34: #{tpu_custom_call.1} parent=1 // pred_check
      _
    $region35: #{tpu_custom_call.1} parent=1 // pred_check_branch
      %52 = sbr.rel (0) target = $region37
    $region36: #{tpu_custom_call.1} parent=1 // pred_region
      %53 = dma.done [#allocation5], 1024
    $region37: #{tpu_custom_call.1} parent=1 // pred_fallthru
      _
    %v55 = vld [vmem:[%s0] sm:$0xff]
    %v56 = vpack.c.bf16 %v55, %v55
    %v57 = vld [vmem:[%s1] sm:$0x3]
    %59 = vset.pattern.permute.xlu0 0
    %60 = vperm.xlu0 %59, %v56
    %v61 = vpop.permute.xlu0 %60
    %v65 = vunpack.c.l.s4 1966171168
    %v66 = vunpack.c.0.s8 %v65
    %v67 = vlaneseq
    %v68 = vshrl.u32 %v67, 7
    %v69 = vsub.s32 %v66, %v68
    %v70 = vrot.slane %v57, %v69
    %v71 = vcombine.high %v70, %v70
    %v73 = vunpack.c.l.s4 1966171168
    %v74 = vunpack.c.0.s8 %v73
    %v75 = vlaneseq
    %v76 = vshrl.u32 %v75, 7
    %v77 = vsub.s32 %v74, %v76
    %v78 = vrot.slane %v70, %v77
    %v80 = vunpack.c.l.s4 1966171168
    %v81 = vunpack.c.0.s8 %v80
    %v82 = vlaneseq
    %v83 = vshrl.u32 %v82, 7
    %v84 = vsub.s32 %v81, %v83
    %v85 = vrot.slane %v71, %v84
    %v87 = vpack.i.b16 %v78, %v78
    %v89 = vlaneseq
    %v90 = vshrl.u32 %v89, 7
    %v91 = vsub.s32 0, %v90
    %v92 = vrot.slane %v87, %v91
    %v94 = vpack.i.b16 %v85, %v85
    %v96 = vlaneseq
    %v97 = vshrl.u32 %v96, 7
    %v98 = vsub.s32 0, %v97
    %v99 = vrot.slane %v94, %v98
    %v100 = vmul.bf16 %v61, %v92
    %v101 = vmul.bf16 %v61, %v99
    %v102 = vld [vmem:[%s2] sm:$0x3]
    %v105 = vunpack.c.l.s4 1966171168
    %v106 = vunpack.c.0.s8 %v105
    %v107 = vlaneseq
    %v108 = vshrl.u32 %v107, 7
    %v109 = vsub.s32 %v106, %v108
    %v110 = vrot.slane %v102, %v109
    %v111 = vcombine.high %v110, %v110
    %v113 = vunpack.c.l.s4 1966171168
    %v114 = vunpack.c.0.s8 %v113
    %v115 = vlaneseq
    %v116 = vshrl.u32 %v115, 7
    %v117 = vsub.s32 %v114, %v116
    %v118 = vrot.slane %v110, %v117
    %v120 = vunpack.c.l.s4 1966171168
    %v121 = vunpack.c.0.s8 %v120
    %v122 = vlaneseq
    %v123 = vshrl.u32 %v122, 7
    %v124 = vsub.s32 %v121, %v123
    %v125 = vrot.slane %v111, %v124
    %v127 = vpack.i.b16 %v118, %v118
    %v129 = vlaneseq
    %v130 = vshrl.u32 %v129, 7
    %v131 = vsub.s32 0, %v130
    %v132 = vrot.slane %v127, %v131
    %v134 = vpack.i.b16 %v125, %v125
    %v136 = vlaneseq
    %v137 = vshrl.u32 %v136, 7
    %v138 = vsub.s32 0, %v137
    %v139 = vrot.slane %v134, %v138
    %v140 = vadd.bf16 %v100, %v132
    %v141 = vadd.bf16 %v101, %v139
    %v142 = vld [vmem:[%s1] sm:$0x3]
    %143 = vset.pattern.permute.xlu0 1
    %144 = vperm.xlu0 %143, %v56
    %v145 = vpop.permute.xlu0 %144
    %v149 = vunpack.c.l.s4 1966171168
    %v150 = vunpack.c.0.s8 %v149
    %v151 = vlaneseq
    %v152 = vshrl.u32 %v151, 7
    %v153 = vsub.s32 %v150, %v152
    %v154 = vrot.slane %v142, %v153
    %v155 = vcombine.high %v154, %v154
    %v157 = vunpack.c.l.s4 1966171168
    %v158 = vunpack.c.0.s8 %v157
    %v159 = vlaneseq
    %v160 = vshrl.u32 %v159, 7
    %v161 = vsub.s32 %v158, %v160
    %v162 = vrot.slane %v154, %v161
    %v164 = vunpack.c.l.s4 1966171168
    %v165 = vunpack.c.0.s8 %v164
    %v166 = vlaneseq
    %v167 = vshrl.u32 %v166, 7
    %v168 = vsub.s32 %v165, %v167
    %v169 = vrot.slane %v155, %v168
    %v171 = vshrl.u32 %v162, 16
    %v172 = vpack.i.b16 %v171, %v171
    %v174 = vlaneseq
    %v175 = vshrl.u32 %v174, 7
    %v176 = vsub.s32 0, %v175
    %v177 = vrot.slane %v172, %v176
    %v179 = vshrl.u32 %v169, 16
    %v180 = vpack.i.b16 %v179, %v179
    %v182 = vlaneseq
    %v183 = vshrl.u32 %v182, 7
    %v184 = vsub.s32 0, %v183
    %v185 = vrot.slane %v180, %v184
    %v186 = vmul.bf16 %v145, %v177
    %v187 = vmul.bf16 %v145, %v185
    %v188 = vadd.bf16 %v140, %v186
    %v189 = vadd.bf16 %v141, %v187
    %v190 = vmax.bf16 %v188, 0
    %v191 = vmax.bf16 %v189, 0
    %v192 = vld [vmem:[#allocation2] sm:$0xf]
    %v193 = vld [vmem:[#allocation2 + $0x4] sm:$0xf]
    %v194 = vld [vmem:[#allocation2 + $0x8] sm:$0xf]
    %v195 = vld [vmem:[#allocation2 + $0xc] sm:$0xf]
    %v196 = vld [vmem:[#allocation2 + $0x10] sm:$0xf]
    %v197 = vld [vmem:[#allocation2 + $0x14] sm:$0xf]
    %v198 = vld [vmem:[#allocation2 + $0x18] sm:$0xf]
    %v199 = vld [vmem:[#allocation2 + $0x1c] sm:$0xf]
    %v200 = vld [vmem:[#allocation2 + $0x20] sm:$0xf]
    %v201 = vld [vmem:[#allocation2 + $0x24] sm:$0xf]
    %v202 = vld [vmem:[#allocation2 + $0x28] sm:$0xf]
    %v203 = vld [vmem:[#allocation2 + $0x2c] sm:$0xf]
    %v204 = vld [vmem:[#allocation2 + $0x30] sm:$0xf]
    %v205 = vld [vmem:[#allocation2 + $0x34] sm:$0xf]
    %v206 = vld [vmem:[#allocation2 + $0x38] sm:$0xf]
    %v207 = vld [vmem:[#allocation2 + $0x3c] sm:$0xf]
    %v208 = vld [vmem:[#allocation2 + $0x40] sm:$0xf]
    %v209 = vld [vmem:[#allocation2 + $0x44] sm:$0xf]
    %v210 = vld [vmem:[#allocation2 + $0x48] sm:$0xf]
    %v211 = vld [vmem:[#allocation2 + $0x4c] sm:$0xf]
    %v212 = vld [vmem:[#allocation2 + $0x50] sm:$0xf]
    %v213 = vld [vmem:[#allocation2 + $0x54] sm:$0xf]
    %v214 = vld [vmem:[#allocation2 + $0x58] sm:$0xf]
    %v215 = vld [vmem:[#allocation2 + $0x5c] sm:$0xf]
    %v216 = vld [vmem:[#allocation2 + $0x60] sm:$0xf]
    %v217 = vld [vmem:[#allocation2 + $0x64] sm:$0xf]
    %v218 = vld [vmem:[#allocation2 + $0x68] sm:$0xf]
    %v219 = vld [vmem:[#allocation2 + $0x6c] sm:$0xf]
    %v220 = vld [vmem:[#allocation2 + $0x70] sm:$0xf]
    %v221 = vld [vmem:[#allocation2 + $0x74] sm:$0xf]
    %v222 = vld [vmem:[#allocation2 + $0x78] sm:$0xf]
    %v223 = vld [vmem:[#allocation2 + $0x7c] sm:$0xf]
    %v256 = vunpack.c.l.b16 %v192
    %v257 = vunpack.c.l.b16 %v193
    %v258 = vunpack.c.l.b16 %v194
    %v259 = vunpack.c.l.b16 %v195
    %v260 = vunpack.c.l.b16 %v196
    %v261 = vunpack.c.l.b16 %v197
    %v262 = vunpack.c.l.b16 %v198
    %v263 = vunpack.c.l.b16 %v199
    %v264 = vunpack.c.l.b16 %v200
    %v265 = vunpack.c.l.b16 %v201
    %v266 = vunpack.c.l.b16 %v202
    %v267 = vunpack.c.l.b16 %v203
    %v268 = vunpack.c.l.b16 %v204
    %v269 = vunpack.c.l.b16 %v205
    %v270 = vunpack.c.l.b16 %v206
    %v271 = vunpack.c.l.b16 %v207
    %v272 = vunpack.c.l.b16 %v208
    %v273 = vunpack.c.l.b16 %v209
    %v274 = vunpack.c.l.b16 %v210
    %v275 = vunpack.c.l.b16 %v211
    %v276 = vunpack.c.l.b16 %v212
    %v277 = vunpack.c.l.b16 %v213
    %v278 = vunpack.c.l.b16 %v214
    %v279 = vunpack.c.l.b16 %v215
    %v280 = vunpack.c.l.b16 %v216
    %v281 = vunpack.c.l.b16 %v217
    %v282 = vunpack.c.l.b16 %v218
    %v283 = vunpack.c.l.b16 %v219
    %v284 = vunpack.c.l.b16 %v220
    %v285 = vunpack.c.l.b16 %v221
    %v286 = vunpack.c.l.b16 %v222
    %v287 = vunpack.c.l.b16 %v223
    %v288 = vpack.c.b16 %v257, %v256
    %v289 = vpack.c.b16 %v259, %v258
    %v290 = vpack.c.b16 %v261, %v260
    %v291 = vpack.c.b16 %v263, %v262
    %v292 = vpack.c.b16 %v265, %v264
    %v293 = vpack.c.b16 %v267, %v266
    %v294 = vpack.c.b16 %v269, %v268
    %v295 = vpack.c.b16 %v271, %v270
    %v296 = vpack.c.b16 %v273, %v272
    %v297 = vpack.c.b16 %v275, %v274
    %v298 = vpack.c.b16 %v277, %v276
    %v299 = vpack.c.b16 %v279, %v278
    %v300 = vpack.c.b16 %v281, %v280
    %v301 = vpack.c.b16 %v283, %v282
    %v302 = vpack.c.b16 %v285, %v284
    %v303 = vpack.c.b16 %v287, %v286
    %320 = vmatprep.subr.bf16.mxu0 0
    %321 = vmatpush1.bf16.msra.mxu0 %v288
    %322 = vmatprep.subr.bf16.mxu0 0
    %323 = vmatpush1.bf16.msra.mxu0 %v289
    %324 = vmatprep.subr.bf16.mxu0 0
    %325 = vmatpush1.bf16.msra.mxu0 %v290
    %326 = vmatprep.subr.bf16.mxu0 0
    %327 = vmatpush1.bf16.msra.mxu0 %v291
    %328 = vmatprep.subr.bf16.mxu0 0
    %329 = vmatpush1.bf16.msra.mxu0 %v292
    %330 = vmatprep.subr.bf16.mxu0 0
    %331 = vmatpush1.bf16.msra.mxu0 %v293
    %332 = vmatprep.subr.bf16.mxu0 0
    %333 = vmatpush1.bf16.msra.mxu0 %v294
    %334 = vmatprep.subr.bf16.mxu0 0
    %335 = vmatpush1.bf16.msra.mxu0 %v295
    %336 = vmatprep.subr.bf16.mxu0 0
    %337 = vmatpush1.bf16.msra.mxu0 %v296
    %338 = vmatprep.subr.bf16.mxu0 0
    %339 = vmatpush1.bf16.msra.mxu0 %v297
    %340 = vmatprep.subr.bf16.mxu0 0
    %341 = vmatpush1.bf16.msra.mxu0 %v298
    %342 = vmatprep.subr.bf16.mxu0 0
    %343 = vmatpush1.bf16.msra.mxu0 %v299
    %344 = vmatprep.subr.bf16.mxu0 0
    %345 = vmatpush1.bf16.msra.mxu0 %v300
    %346 = vmatprep.subr.bf16.mxu0 0
    %347 = vmatpush1.bf16.msra.mxu0 %v301
    %348 = vmatprep.subr.bf16.mxu0 0
    %349 = vmatpush1.bf16.msra.mxu0 %v302
    %350 = vmatprep.subr.bf16.mxu0 0
    %351 = vmatpush1.bf16.msra.mxu0 %v303
    %352 = vmatprep.mubr.bf16.mxu0 %v191
    %353 = vmatmul.mubr.bf16.gmra.mrb[0].mxu0 %v190
    %v354 = vpop.f32.mrb[0].mxu0
    %v355 = vadd.f32 0.0, %v354
    %v356 = vpop.f32.mrb[0].mxu0
    %v357 = vpop.f32.mrb[0].mxu0
    %v358 = vpop.f32.mrb[0].mxu0
    %359 = vdwg.mxu0
    %v360 = vpack.c.bf16 %v355, %v355
    %v361 = vld [vmem:[%s4] sm:$0x1]
    %v363 = vpack.i.b16 %v361, %v361
    %v365 = vlaneseq
    %v366 = vshrl.u32 %v365, 7
    %v367 = vsub.s32 0, %v366
    %v368 = vrot.slane %v363, %v367
    %v369 = vadd.bf16 %v360, %v368
    %v370 = vmax.bf16 %v369, 0
    %v371 = vld [vmem:[#allocation4] sm:$0xf]
    %v372 = vld [vmem:[#allocation4 + $0x4] sm:$0xf]
    %v373 = vld [vmem:[#allocation4 + $0x8] sm:$0xf]
    %v374 = vld [vmem:[#allocation4 + $0xc] sm:$0xf]
    %v375 = vld [vmem:[#allocation4 + $0x10] sm:$0xf]
    %v376 = vld [vmem:[#allocation4 + $0x14] sm:$0xf]
    %v377 = vld [vmem:[#allocation4 + $0x18] sm:$0xf]
    %v378 = vld [vmem:[#allocation4 + $0x1c] sm:$0xf]
    %v379 = vld [vmem:[#allocation4 + $0x20] sm:$0xf]
    %v380 = vld [vmem:[#allocation4 + $0x24] sm:$0xf]
    %v381 = vld [vmem:[#allocation4 + $0x28] sm:$0xf]
    %v382 = vld [vmem:[#allocation4 + $0x2c] sm:$0xf]
    %v383 = vld [vmem:[#allocation4 + $0x30] sm:$0xf]
    %v384 = vld [vmem:[#allocation4 + $0x34] sm:$0xf]
    %v385 = vld [vmem:[#allocation4 + $0x38] sm:$0xf]
    %v386 = vld [vmem:[#allocation4 + $0x3c] sm:$0xf]
    %v387 = vld [vmem:[%s6] sm:$0x1]
    %v389 = vlaneseq
    %v390 = vshrl.u32 %v389, 7
    %v391 = vsub.s32 0, %v390
    %v392 = vrot.slane %v387, %v391
    %v410 = vunpack.c.l.b16 %v371
    %v411 = vunpack.c.l.b16 %v372
    %v412 = vunpack.c.l.b16 %v373
    %v413 = vunpack.c.l.b16 %v374
    %v414 = vunpack.c.l.b16 %v375
    %v415 = vunpack.c.l.b16 %v376
    %v416 = vunpack.c.l.b16 %v377
    %v417 = vunpack.c.l.b16 %v378
    %v418 = vunpack.c.l.b16 %v379
    %v419 = vunpack.c.l.b16 %v380
    %v420 = vunpack.c.l.b16 %v381
    %v421 = vunpack.c.l.b16 %v382
    %v422 = vunpack.c.l.b16 %v383
    %v423 = vunpack.c.l.b16 %v384
    %v424 = vunpack.c.l.b16 %v385
    %v425 = vunpack.c.l.b16 %v386
    %v426 = vpack.c.b16 %v411, %v410
    %v427 = vpack.c.b16 %v413, %v412
    %v428 = vpack.c.b16 %v415, %v414
    %v429 = vpack.c.b16 %v417, %v416
    %v430 = vpack.c.b16 %v419, %v418
    %v431 = vpack.c.b16 %v421, %v420
    %v432 = vpack.c.b16 %v423, %v422
    %v433 = vpack.c.b16 %v425, %v424
    %442 = vmatprep.subr.bf16.mxu0 0
    %443 = vmatpush1.bf16.msra.mxu0 %v426
    %444 = vmatprep.subr.bf16.mxu0 0
    %445 = vmatpush1.bf16.msra.mxu0 %v427
    %446 = vmatprep.subr.bf16.mxu0 0
    %447 = vmatpush1.bf16.msra.mxu0 %v428
    %448 = vmatprep.subr.bf16.mxu0 0
    %449 = vmatpush1.bf16.msra.mxu0 %v429
    %450 = vmatprep.subr.bf16.mxu0 0
    %451 = vmatpush1.bf16.msra.mxu0 %v430
    %452 = vmatprep.subr.bf16.mxu0 0
    %453 = vmatpush1.bf16.msra.mxu0 %v431
    %454 = vmatprep.subr.bf16.mxu0 0
    %455 = vmatpush1.bf16.msra.mxu0 %v432
    %456 = vmatprep.subr.bf16.mxu0 0
    %457 = vmatpush1.bf16.msra.mxu0 %v433
    %458 = vmatprep.subr.bf16.mxu0 0
    %459 = vmatpush1.bf16.msra.mxu0 0
    %460 = vmatprep.subr.bf16.mxu0 0
    %461 = vmatpush1.bf16.msra.mxu0 0
    %462 = vmatprep.subr.bf16.mxu0 0
    %463 = vmatpush1.bf16.msra.mxu0 0
    %464 = vmatprep.subr.bf16.mxu0 0
    %465 = vmatpush1.bf16.msra.mxu0 0
    %466 = vmatprep.subr.bf16.mxu0 0
    %467 = vmatpush1.bf16.msra.mxu0 0
    %468 = vmatprep.subr.bf16.mxu0 0
    %469 = vmatpush1.bf16.msra.mxu0 0
    %470 = vmatprep.subr.bf16.mxu0 0
    %471 = vmatpush1.bf16.msra.mxu0 0
    %472 = vmatprep.subr.bf16.mxu0 0
    %473 = vmatpush1.bf16.msra.mxu0 0
    %474 = vmatprep.mubr.bf16.mxu0 0
    %475 = vmatmul.mubr.bf16.gmra.mrb[0].mxu0 %v370
    %v476 = vpop.f32.mrb[0].mxu0
    %v477 = vadd.f32 %v392, %v476
    %v478 = vpop.f32.mrb[0].mxu0
    %v479 = vpop.f32.mrb[0].mxu0
    %v480 = vpop.f32.mrb[0].mxu0
    %481 = vdwg.mxu0
    %vm482 = vcmask 23552
    %483 = vst.msk [vmem:[%s7] sm:$0xff] %vm482, %v477
    // Predicated region
    $region38: #{tpu_custom_call.1} parent=1 // pred_check
      _
    $region39: #{tpu_custom_call.1} parent=1 // pred_check_branch
      %485 = sbr.rel (0) target = $region41
    $region40: #{tpu_custom_call.1} parent=1 // pred_region
      _
    $region41: #{tpu_custom_call.1} parent=1 // pred_fallthru
      _
    // Predicated region
    $region42: #{tpu_custom_call.1} parent=1 // pred_check
      _
    $region43: #{tpu_custom_call.1} parent=1 // pred_check_branch
      %487 = sbr.rel (0) target = $region45
    $region44: #{tpu_custom_call.1} parent=1 // pred_region
      _
    $region45: #{tpu_custom_call.1} parent=1 // pred_fallthru
      _
    %488 = vsyncpa [#allocation3], 1
    %489 = vsyncpa [#allocation5], 1

</llo_original>
